<compile_context>
chip_gen: v7x
topology: tpu7x:2x2x1
jax: 0.10.0
libtpu: 0.0.40
codegen_flags: <defaults>
</compile_context>

<pallas_src>
import math

import jax
import jax.numpy as jnp
from jax.experimental import pallas as pl
from jax.experimental.pallas import tpu as pltpu


def _make_pe_table(d_model: int, max_len: int) -> jnp.ndarray:
    """Sinusoidal positional-encoding table, (max_len, 1, d_model) — matches the torch module."""
    position = jnp.arange(max_len, dtype=jnp.float32)[:, None]            # (max_len, 1)
    div_term = jnp.exp(
        jnp.arange(0, d_model, 2, dtype=jnp.float32)
        * (-math.log(10000.0) / d_model)
    )                                                                      # (ceil(d/2),)
    ang = position * div_term                                              # (max_len, ceil(d/2))
    pe = jnp.zeros((max_len, d_model), dtype=jnp.float32)
    pe = pe.at[:, 0::2].set(jnp.sin(ang))
    if d_model % 2 != 0:
        pe = pe.at[:, 1::2].set(jnp.cos(ang)[:, :-1])
    else:
        pe = pe.at[:, 1::2].set(jnp.cos(ang))
    # unsqueeze(0).transpose(0, 1) -> (max_len, 1, d_model)
    return pe[:, None, :]


# ---------------------------------------------------------------------------
# Kernels
# ---------------------------------------------------------------------------

def _pe_add_sliced_kernel(x_ref, pe_ref, o_ref):
    """x_ref/o_ref: (ts, gb*D); pe_ref: (ts, D) with D % 128 == 0.

    Unrolled static loop over batch slices: whole-vreg, 128-aligned views,
    no output-sized VMEM temporary, no extra vst traffic.
    """
    pe = pe_ref[...]
    d = pe.shape[-1]
    reps = x_ref.shape[-1] // d          # == batch elements per tile (static)
    for b in range(reps):
        sl = slice(b * d, (b + 1) * d)
        o_ref[:, sl] = x_ref[:, sl] + pe


def _pe_add_concat_kernel(x_ref, pe_ref, o_ref):
    """Fallback for D not a multiple of 128: lane-concat broadcast then add."""
    pe = pe_ref[...]
    reps = x_ref.shape[-1] // pe.shape[-1]
    if reps > 1:
        pe = jnp.concatenate([pe] * reps, axis=-1)
    o_ref[...] = x_ref[...] + pe


def _flat_add_kernel(x_ref, pe_ref, o_ref):
    """Tiny-shape path: plain elementwise add on a (1, N) lane-dense slab."""
    o_ref[...] = x_ref[...] + pe_ref[...]


# ---------------------------------------------------------------------------
# Tiling heuristics
# ---------------------------------------------------------------------------

def _hw_params():
    """(tile_budget_bytes, vmem_limit_bytes, min_grid_steps) — generation aware."""
    tile_budget = 2 << 20          # measured ~85% HBM-roofline knee on v5e/v6e
    vmem_limit = 32 << 20
    min_steps = 2
    try:
        info = pltpu.get_tpu_info()
        vmem_cap = int(info.vmem_capacity_bytes)
        if vmem_cap <= (64 << 20):
            # v7x-class: ~3.2 TB/s HBM per TC, 64 MiB VMEM, 2 TensorCores.
            tile_budget = 6 << 20
            vmem_limit = 48 << 20
            min_steps = 4          # >= 2 steps per TensorCore so each pipelines
    except Exception:              # interpret mode / non-TPU / older jax
        pass
    return tile_budget, vmem_limit, min_steps


def _choose_tiles(S, B, D, itemsize, tile_budget, sub_mult, min_steps):
    """Pick (ts, gb): sequence rows and batch elements per tile.

    ts is a multiple of the dtype's sublane packing (or == S); if gb < B then
    gb*D is a multiple of 128 so interior x tiles stay lane-dense.
    """
    d_bytes = D * itemsize
    ts_min = S if S < sub_mult else sub_mult

    # Batch-group (lane-axis) tiling only when even a minimal-height
    # full-width strip exceeds the per-tile budget.
    if B > 1 and ts_min * B * d_bytes > tile_budget:
        gb_cap = min(B - 1, max(1, tile_budget // max(ts_min * d_bytes, 1)))
        for cand in range(gb_cap, 0, -1):
            if (cand * D) % 128 == 0:
                return ts_min, cand
        # No 128-aligned batch split exists; fall through to row-only tiling.
        # TODO(synk): tile inside D for the (rare) huge-row, misaligned-D case.

    row_bytes = B * d_bytes
    ts = (tile_budget // max(row_bytes, 1)) // sub_mult * sub_mult
    ts = max(ts, sub_mult)
    if ts >= S:
        ts = S
    # Prefer >= min_steps grid steps (per-core pipelining / megacore sharding)
    # as long as each step keeps a worthwhile (>= ~1 MiB) DMA.
    steps = -(-S // ts)
    while steps < min_steps and ts > sub_mult:
        cand = -(-(ts // 2) // sub_mult) * sub_mult
        if cand <= 0 or cand >= ts or cand * row_bytes < (1 << 20):
            break
        ts = cand
        steps = -(-S // ts)
    return ts, B


# ---------------------------------------------------------------------------
# Wrapper
# ---------------------------------------------------------------------------

def positional_encoding(x: jnp.ndarray, pe: jnp.ndarray) -> jnp.ndarray:
    """x: (S, B, D);  pe: (max_len, 1, D)  ->  (S, B, D).  Eval-mode forward."""
    S, B, D = x.shape
    max_len = pe.shape[0]
    if S > max_len:
        raise ValueError(f"sequence length {S} exceeds max_len {max_len}")

    itemsize = jnp.dtype(x.dtype).itemsize
    sub_mult = max(8, 32 // itemsize)          # 32-bit:8, bf16:16, int8/fp8:32
    tile_budget, vmem_limit, min_steps = _hw_params()

    # pe: drop the singleton batch axis, slice to the live rows, match dtype.
    pe2 = pe.reshape(max_len, D)[:S].astype(x.dtype)   # tiny (S, D) copy

    # --- tiny-shape path: lane width below 128 would force masked stores ---
    if B * D < 128 and S * B * D * itemsize <= (2 << 20):
        n = S * B * D
        x2 = x.reshape(1, n)
        pe_full = jnp.broadcast_to(pe2[:, None, :], (S, B, D)).reshape(1, n)
        out2 = pl.pallas_call(
            _flat_add_kernel,
            out_shape=jax.ShapeDtypeStruct((1, n), x.dtype),
        )(x2, pe_full)
        return out2.reshape(S, B, D)

    # --- main path ---
    ts, gb = _choose_tiles(S, B, D, itemsize, tile_budget, sub_mult, min_steps)
    x2 = x.reshape(S, B * D)                   # free trailing-dim merge

    grid = (pl.cdiv(S, ts), pl.cdiv(B, gb))
    kernel = _pe_add_sliced_kernel if D % 128 == 0 else _pe_add_concat_kernel

    # Make sure the scoped limit covers the chosen tiles (double-buffered
    # in + out + pe, plus slack for the concat temporary on the fallback path).
    tile_x_bytes = ts * gb * D * itemsize
    needed = 5 * tile_x_bytes + 2 * ts * D * itemsize + (2 << 20)
    vmem_limit = max(vmem_limit, min(needed, 112 << 20))

    out2 = pl.pallas_call(
        kernel,
        out_shape=jax.ShapeDtypeStruct((S, B * D), x.dtype),
        grid_spec=pltpu.PrefetchScalarGridSpec(
            num_scalar_prefetch=0,
            grid=grid,
            in_specs=[
                pl.BlockSpec((ts, gb * D), lambda s, b: (s, b)),
                pl.BlockSpec((ts, D), lambda s, b: (s, 0)),
            ],
            out_specs=pl.BlockSpec((ts, gb * D), lambda s, b: (s, b)),
        ),
        compiler_params=pltpu.CompilerParams(
            dimension_semantics=("parallel", "parallel"),
            vmem_limit_bytes=int(vmem_limit),
        ),
    )(x2, pe2)

    return out2.reshape(S, B, D)


if __name__ == "__main__":
    key = jax.random.PRNGKey(0)
    MAX_LEN = 64

    # Small shapes exercising each dispatch path:
    #   (8, 2, 32)   -> tiny path (B*D < 128, re-folded lane-dense slab)
    #   (16, 2, 128) -> sliced-add path (D % 128 == 0)
    #   (12, 2, 64)  -> concat-broadcast path (B*D >= 128, D % 128 != 0)
    cases = [(8, 2, 32), (16, 2, 128), (12, 2, 64)]

    for i, (S, B, D) in enumerate(cases):
        k = jax.random.fold_in(key, i)
        x = jax.random.normal(k, (S, B, D), dtype=jnp.float32)
        pe = _make_pe_table(D, MAX_LEN)

        out = jax.block_until_ready(positional_encoding(x, pe))

        # Pure-JAX reference of the forward pass (eval mode: dropout = identity).
        ref = x + pe[:S]
        assert out.shape == (S, B, D)
        assert jnp.allclose(out, ref, atol=1e-6, rtol=1e-6), (S, B, D)

    print("KERNEL_OK")
</pallas_src>

<mosaic_0001>
module attributes {stable_mosaic.version = 11 : i64} {
  func.func @_flat_add_kernel(%arg0: memref<1x512xf32, #tpu.memory_space<vmem>>, %arg1: memref<1x512xf32, #tpu.memory_space<vmem>>, %arg2: memref<1x512xf32, #tpu.memory_space<vmem>>) attributes {dimension_semantics = [], scalar_prefetch = 0 : i64, scratch_operands = 0 : i64, tpu.core_type = #tpu.core_type<tc>} {
    %c0 = arith.constant 0 : index
    %c0_0 = arith.constant 0 : index
    %0 = vector.load %arg0[%c0, %c0_0] : memref<1x512xf32, #tpu.memory_space<vmem>>, vector<1x512xf32>
    %c0_1 = arith.constant 0 : index
    %c0_2 = arith.constant 0 : index
    %1 = vector.load %arg1[%c0_1, %c0_2] : memref<1x512xf32, #tpu.memory_space<vmem>>, vector<1x512xf32>
    %2 = arith.addf %0, %1 : vector<1x512xf32>
    %c0_3 = arith.constant 0 : index
    %c0_4 = arith.constant 0 : index
    %3 = vector.load %arg2[%c0_3, %c0_4] : memref<1x512xf32, #tpu.memory_space<vmem>>, vector<1x512xf32>
    tpu.vector_store %arg2[%c0_3, %c0_4], %2 {strides = array<i32>} : memref<1x512xf32, #tpu.memory_space<vmem>>, vector<1x512xf32>,
    return
  }
}

</mosaic_0001>

<llo_original>
// kernel: tpu_custom_call.1
$region0: #{tpu_custom_call.1}
  #allocation0 [shape = 'u32[]', space=smem, size = 0x4, offset = 0x4, fixed_abs, tag = 'smem constant byte address 0x4 - core index']
  #allocation1 [shape = 'u32[144,128]{1,0:T(1,128)}', space=vmem, size = 0x12000, scoped, tag = 'internal scratch']
  %s0 = inlined_call_operand.hbm [shape: f32[1,512], index: 0, kind: input, shape index: {}]
  %s1 = inlined_call_operand.hbm [shape: f32[1,512], index: 1, kind: input, shape index: {}]
  %s2 = inlined_call_operand.hbm [shape: f32[1,512], index: 2, kind: output, shape index: {}]
  %s3 = sld [smem:[#allocation0]]
  $region26: #{tpu_custom_call.1} parent=0
    _
  %s5 = ssub.s32 1, %s3
  %s6 = scalar_select 0, %s5, %s3
  $region1: #{tpu_custom_call.1} parent=0
    #allocation2 [shape = 'u8[2048]{0}', space=vmem, size = 0x800, scoped, tag = 'input window, operand 0, single buffered']
    #allocation3 [shape = 's32[1]{0}', space=sflag, size = 0x4, scoped, tag = 'scoped memory for tpu_custom_call.1']
    #allocation4 [shape = 's32[1]{0}', space=sflag, size = 0x4, scoped, tag = 'scoped memory for tpu_custom_call.1']
    #allocation5 [shape = 'u8[2048]{0}', space=vmem, size = 0x800, scoped, tag = 'input window, operand 1, single buffered']
    #allocation6 [shape = 's32[1]{0}', space=sflag, size = 0x4, scoped, tag = 'scoped memory for tpu_custom_call.1']
    #allocation7 [shape = 'u8[2048]{0}', space=vmem, size = 0x800, scoped, tag = 'output window, operand 0, single buffered']
    %7 = vsyncpa [#allocation3], 0
    %8 = vsyncpa [#allocation6], 0
    %9 = vsyncpa [#allocation4], 0
    // Predicated region
    $region2: #{tpu_custom_call.1} parent=1 // pred_check
      _
    $region3: #{tpu_custom_call.1} parent=1 // pred_check_branch
      %11 = sbr.rel (0) target = $region5
    $region4: #{tpu_custom_call.1} parent=1 // pred_region
      %s13 = ssub.s32 64, 64
      %14 = vsyncadd [#allocation3], %s13
      %s16 = sshll.u32 [#allocation2], 4
      %s17 = int_to_ptr.vmem [resolvable:$true] %s16
      %19 = dma.hbm_to_vmem [thread:$0]  %s0, 64, %s17, [#allocation3]
    $region5: #{tpu_custom_call.1} parent=1 // pred_fallthru
      _
    // Predicated region
    $region6: #{tpu_custom_call.1} parent=1 // pred_check
      _
    $region7: #{tpu_custom_call.1} parent=1 // pred_check_branch
      %21 = sbr.rel (0) target = $region9
    $region8: #{tpu_custom_call.1} parent=1 // pred_region
      %s23 = ssub.s32 64, 64
      %24 = vsyncadd [#allocation6], %s23
      %s26 = sshll.u32 [#allocation5], 4
      %s27 = int_to_ptr.vmem [resolvable:$true] %s26
      %29 = dma.hbm_to_vmem [thread:$0]  %s1, 64, %s27, [#allocation6]
    $region9: #{tpu_custom_call.1} parent=1 // pred_fallthru
      _
    // Predicated region
    $region10: #{tpu_custom_call.1} parent=1 // pred_check
      _
    $region11: #{tpu_custom_call.1} parent=1 // pred_check_branch
      %31 = sbr.rel (0) target = $region13
    $region12: #{tpu_custom_call.1} parent=1 // pred_region
      %32 = dma.done [#allocation3], 64
    $region13: #{tpu_custom_call.1} parent=1 // pred_fallthru
      _
    // Predicated region
    $region14: #{tpu_custom_call.1} parent=1 // pred_check
      _
    $region15: #{tpu_custom_call.1} parent=1 // pred_check_branch
      %34 = sbr.rel (0) target = $region17
    $region16: #{tpu_custom_call.1} parent=1 // pred_region
      %35 = dma.done [#allocation6], 64
    $region17: #{tpu_custom_call.1} parent=1 // pred_fallthru
      _
    %v36 = vld [vmem:[#allocation2] sm:$0xf]
    %v37 = vld [vmem:[#allocation5] sm:$0xf]
    %v38 = vadd.f32 %v36, %v37
    %v39 = vlaneseq
    %vm40 = vcmp.ge.s32.totalorder %v39, 0
    %vm41 = vcmp.lt.s32.totalorder %v39, 512
    %vm42 = vmand %vm40, %vm41
    %43 = vst.msk [vmem:[#allocation7] sm:$0xf] %vm42, %v38
    // Predicated region
    $region18: #{tpu_custom_call.1} parent=1 // pred_check
      _
    $region19: #{tpu_custom_call.1} parent=1 // pred_check_branch
      %45 = sbr.rel (0) target = $region21
    $region20: #{tpu_custom_call.1} parent=1 // pred_region
      %s47 = ssub.s32 64, 64
      %48 = vsyncadd [#allocation4], %s47
      %s50 = sshll.u32 [#allocation7], 4
      %s51 = int_to_ptr.vmem [resolvable:$true] %s50
      %53 = dma.vmem_to_hbm [thread:$0]  %s51, 64, %s2, [#allocation4]
    $region21: #{tpu_custom_call.1} parent=1 // pred_fallthru
      _
    // Predicated region
    $region22: #{tpu_custom_call.1} parent=1 // pred_check
      _
    $region23: #{tpu_custom_call.1} parent=1 // pred_check_branch
      %55 = sbr.rel (0) target = $region25
    $region24: #{tpu_custom_call.1} parent=1 // pred_region
      %56 = dma.done [#allocation4], 64
    $region25: #{tpu_custom_call.1} parent=1 // pred_fallthru
      _
    %57 = vsyncpa [#allocation3], 1
    %58 = vsyncpa [#allocation6], 1
    %59 = vsyncpa [#allocation4], 1

</llo_original>
